<compile_context>
chip_gen: v7x
topology: tpu7x:2x2x1
jax: 0.10.0
libtpu: 0.0.40
codegen_flags: <defaults>
</compile_context>

<pallas_src>
import math

import jax
import jax.numpy as jnp
from jax.experimental import pallas as pl
from jax.experimental.pallas import tpu as pltpu

# --- cfg constants (cfg.MODEL.ROI_HEADS.* etc.), chosen deterministically ---
SCORE_THRESH = 0.05
BOX_CODER_WEIGHTS = (10.0, 10.0, 5.0, 5.0)
BBOX_XFORM_CLIP = math.log(1000.0 / 16.0)

_VMEM_LIMIT = 32 * 1024 * 1024          # raise v5e's 16 MiB default; OK on all gens
_VMEM_TILE_BUDGET = 24 * 1024 * 1024    # double-buffered working set budget


def _round_up(x, m):
    return ((x + m - 1) // m) * m


def _lane_pad(c):
    return _round_up(max(c, 1), 128)


def _choose_tile(n, max_tile, row_bytes, min_steps=2):
    """Largest row tile that (a) keeps >= min_steps grid steps where possible
    (v7x: 2 TensorCores share a 'parallel' grid axis), (b) keeps the
    double-buffered VMEM working set under budget, (c) is a multiple of 8."""
    budget_rows = _VMEM_TILE_BUDGET // max(2 * row_bytes, 1)     # 2x: double buffer
    budget_rows = max(8, (budget_rows // 8) * 8)
    target = _round_up(pl.cdiv(n, min_steps), 8)
    return int(max(8, min(max_tile, budget_rows, target)))


# ----------------------------------------------------------------------------
# Box post-processing kernel: softmax + decode + clip + fg max/label
# ----------------------------------------------------------------------------
def _postproc_kernel(logits_ref, reg_ref, prop_ref, whm1_ref,
                     prob_ref, boxes_ref, stats_ref):
    wx, wy, ww, wh = BOX_CODER_WEIGHTS

    # ---- class_prob = softmax(class_logits, -1) ----
    logits = logits_ref[...]                                 # (T, C)
    m = jnp.max(logits, axis=-1, keepdims=True)
    e = jnp.exp(logits - m)
    s = jnp.sum(e, axis=-1, keepdims=True)
    prob = e * pl.reciprocal(s, approx=True)                 # EUP reciprocal (free slot)
    prob_ref[...] = prob

    # ---- BoxCoder.decode(box_regression, proposals) on the native (T, 4C)
    #      interleaved layout: columns are [dx, dy, dw, dh] per class. ----
    prop = prop_ref[...]                                     # (T, 4) xyxy
    widths = prop[:, 2:3] - prop[:, 0:1] + 1.0               # TO_REMOVE = 1
    heights = prop[:, 3:4] - prop[:, 1:2] + 1.0
    ctr_x = prop[:, 0:1] + 0.5 * widths
    ctr_y = prop[:, 1:2] + 0.5 * heights

    reg = reg_ref[...]                                       # (T, 4C)
    four_c = reg.shape[-1]
    col = jax.lax.broadcasted_iota(jnp.int32, reg.shape, 1)
    is_x = (col % 2) == 0                                    # dx/dw cols -> x coords
    is_lo = (col % 4) < 2                                    # dx/dy cols -> x1/y1

    # Output col j%4 in {0,1} needs the dw/dh value from col j+2;
    # output col j%4 in {2,3} needs the dx/dy value from col j-2.
    # pltpu.roll matches jnp.roll semantics: result[j] = x[(j - shift) % n].
    reg_from_left = pltpu.roll(reg, 2, axis=1)               # [j] <- reg[j-2]
    reg_from_right = pltpu.roll(reg, four_c - 2, axis=1)     # [j] <- reg[j+2]
    ctr_delta = jnp.where(is_lo, reg, reg_from_left)         # dx/dy aligned to col
    size_delta = jnp.where(is_lo, reg_from_right, reg)       # dw/dh aligned to col

    ref_size = jnp.where(is_x, widths, heights)              # broadcast (T,1)->(T,4C)
    ref_ctr = jnp.where(is_x, ctr_x, ctr_y)
    inv_ctr_w = (1.0 / wx) if wx == wy else jnp.where(is_x, 1.0 / wx, 1.0 / wy)
    inv_size_w = (1.0 / ww) if ww == wh else jnp.where(is_x, 1.0 / ww, 1.0 / wh)

    pred_ctr = ctr_delta * inv_ctr_w * ref_size + ref_ctr
    d_size = jnp.minimum(size_delta * inv_size_w, BBOX_XFORM_CLIP)
    half_size = 0.5 * jnp.exp(d_size) * ref_size

    box = jnp.where(is_lo, pred_ctr - half_size, pred_ctr + half_size - 1.0)

    # ---- BoxList.clip_to_image(remove_empty=False), per-row image bounds ----
    bound = jnp.where(is_x, whm1_ref[:, 0:1], whm1_ref[:, 1:2])
    boxes_ref[...] = jnp.clip(box, 0.0, bound)

    # ---- scores, labels = prob[:, 1:].max(1); labels += 1 (single packed store) ----
    ccol = jax.lax.broadcasted_iota(jnp.int32, prob.shape, 1)
    fg = jnp.where(ccol > 0, prob, -1.0)                     # probs >= 0
    maxv = jnp.max(fg, axis=-1, keepdims=True)
    cand = jnp.where(fg == maxv, ccol, jnp.int32(prob.shape[-1]))
    lbl = jnp.min(cand, axis=-1, keepdims=True)              # first-index tie-break
    statcol = jax.lax.broadcasted_iota(jnp.int32, (prob.shape[0], 2), 1)
    stats_ref[...] = jnp.where(statcol == 0, maxv, lbl.astype(jnp.float32))


def postprocess_boxes(class_logits, box_regression, proposals, images_whm1,
                      max_tile_n=512):
    """Dense pre-NMS part of PostProcessor.forward for a whole batch.

    All images' proposals are concatenated along N (one pallas_call per batch).

    Args:
      class_logits:   (N, C)   float logits
      box_regression: (N, 4C)  float, class-interleaved [dx, dy, dw, dh]
      proposals:      (N, 4)   float xyxy reference boxes
      images_whm1:    (N, 2)   float per-row (img_w - 1, img_h - 1) clip bounds
    Returns:
      prob (N, C), boxes (N, 4C) decoded+clipped, max_scores (N,), labels (N,)
    """
    N, C = class_logits.shape
    assert box_regression.shape == (N, 4 * C)

    row_bytes = 4 * (2 * _lane_pad(C) + 2 * _lane_pad(4 * C) + 3 * 128)
    tile_n = _choose_tile(N, max_tile_n, row_bytes)
    grid = (pl.cdiv(N, tile_n),)

    prob, boxes, stats = pl.pallas_call(
        _postproc_kernel,
        grid=grid,
        out_shape=(
            jax.ShapeDtypeStruct((N, C), jnp.float32),       # class_prob
            jax.ShapeDtypeStruct((N, 4 * C), jnp.float32),   # boxes, interleaved
            jax.ShapeDtypeStruct((N, 2), jnp.float32),       # [max fg score, label]
        ),
        in_specs=[
            pl.BlockSpec((tile_n, C), lambda i: (i, 0)),       # logits
            pl.BlockSpec((tile_n, 4 * C), lambda i: (i, 0)),   # interleaved deltas
            pl.BlockSpec((tile_n, 4), lambda i: (i, 0)),       # proposals
            pl.BlockSpec((tile_n, 2), lambda i: (i, 0)),       # per-row clip bounds
        ],
        out_specs=(
            pl.BlockSpec((tile_n, C), lambda i: (i, 0)),
            pl.BlockSpec((tile_n, 4 * C), lambda i: (i, 0)),
            pl.BlockSpec((tile_n, 2), lambda i: (i, 0)),
        ),
        compiler_params=pltpu.CompilerParams(
            dimension_semantics=("parallel",),
            vmem_limit_bytes=_VMEM_LIMIT),
    )(class_logits.astype(jnp.float32),
      box_regression.astype(jnp.float32),
      proposals.astype(jnp.float32),
      images_whm1.astype(jnp.float32))

    max_scores = stats[:, 0]
    labels = stats[:, 1].astype(jnp.int32)
    # NOTE: inds_all = prob > score_thresh is a single compare the consumer
    # (filter_results) does on `prob`; not emitted to avoid an extra (N, C)
    # integer HBM writeback stream.
    return prob, boxes, max_scores, labels


# ----------------------------------------------------------------------------
# AdaptiveAvgPool2d(1) + view(N, -1) for the output_feature path
# ----------------------------------------------------------------------------
def _avgpool_kernel(f_ref, o_ref):
    # load in native dtype (bf16/f32), accumulate the mean in f32 in-kernel.
    o_ref[...] = jnp.mean(f_ref[...].astype(jnp.float32), axis=-1)


def adaptive_avgpool_to_vec(features, max_tile_n=128):
    """AdaptiveAvgPool2d(1) + view(N, -1) for NCHW features -> (N, Cf) f32."""
    N, Cf, H, W = features.shape
    hw = H * W
    flat = features.reshape(N, Cf, hw)                 # metadata-only reshape
    # VMEM block is tile_n * Cf * lane_pad(hw) * itemsize (49 -> 128 lane pad).
    row_bytes = Cf * _lane_pad(hw) * flat.dtype.itemsize + _lane_pad(Cf) * 4
    tile_n = _choose_tile(N, max_tile_n, row_bytes)
    grid = (pl.cdiv(N, tile_n),)
    pooled = pl.pallas_call(
        _avgpool_kernel,
        grid=grid,
        out_shape=jax.ShapeDtypeStruct((N, Cf), jnp.float32),
        in_specs=[pl.BlockSpec((tile_n, Cf, hw), lambda i: (i, 0, 0))],
        out_specs=pl.BlockSpec((tile_n, Cf), lambda i: (i, 0)),
        compiler_params=pltpu.CompilerParams(
            dimension_semantics=("parallel",),
            vmem_limit_bytes=_VMEM_LIMIT),
    )(flat)
    return pooled


# ----------------------------------------------------------------------------
# Plain-JAX reference of the same math (sanity check)
# ----------------------------------------------------------------------------
def _reference(class_logits, box_regression, proposals, whm1):
    wx, wy, ww, wh = BOX_CODER_WEIGHTS
    N = class_logits.shape[0]
    prob = jax.nn.softmax(class_logits, axis=-1)
    widths = proposals[:, 2] - proposals[:, 0] + 1.0
    heights = proposals[:, 3] - proposals[:, 1] + 1.0
    ctr_x = proposals[:, 0] + 0.5 * widths
    ctr_y = proposals[:, 1] + 0.5 * heights
    dx = box_regression[:, 0::4] / wx
    dy = box_regression[:, 1::4] / wy
    dw = jnp.minimum(box_regression[:, 2::4] / ww, BBOX_XFORM_CLIP)
    dh = jnp.minimum(box_regression[:, 3::4] / wh, BBOX_XFORM_CLIP)
    pcx = dx * widths[:, None] + ctr_x[:, None]
    pcy = dy * heights[:, None] + ctr_y[:, None]
    pw = jnp.exp(dw) * widths[:, None]
    ph = jnp.exp(dh) * heights[:, None]
    wb, hb = whm1[:, 0:1], whm1[:, 1:2]
    x1 = jnp.clip(pcx - 0.5 * pw, 0.0, wb)
    y1 = jnp.clip(pcy - 0.5 * ph, 0.0, hb)
    x2 = jnp.clip(pcx + 0.5 * pw - 1.0, 0.0, wb)
    y2 = jnp.clip(pcy + 0.5 * ph - 1.0, 0.0, hb)
    boxes = jnp.stack([x1, y1, x2, y2], axis=-1).reshape(N, -1)
    return prob, boxes


if __name__ == "__main__":
    key = jax.random.PRNGKey(0)
    # Two images' worth of proposals, batched into one pallas_call.
    boxes_per_image = (24, 24)
    image_sizes = ((64, 48), (80, 56))      # BoxList.size = (width, height)
    N = sum(boxes_per_image)
    C = 32                                  # classes incl. background
    Cf, H, W = 16, 7, 7                     # ROI feature channels / spatial

    k1, k2, k3, k4, k5 = jax.random.split(key, 5)
    class_logits = jax.random.normal(k1, (N, C), jnp.float32)
    box_regression = jax.random.normal(k2, (N, 4 * C), jnp.float32) * 0.5
    xy = jax.random.uniform(k3, (N, 2), jnp.float32, minval=0.0, maxval=30.0)
    wh = jax.random.uniform(k4, (N, 2), jnp.float32, minval=4.0, maxval=20.0)
    proposals = jnp.concatenate([xy, xy + wh], axis=1)          # xyxy
    features = jax.random.normal(k5, (N, Cf, H, W), jnp.float32).astype(jnp.bfloat16)

    # per-row clip bounds (img_w - 1, img_h - 1) so one call serves all images.
    whm1 = jnp.concatenate([
        jnp.tile(jnp.array([[float(w_) - 1.0, float(h_) - 1.0]], jnp.float32), (n, 1))
        for n, (w_, h_) in zip(boxes_per_image, image_sizes)], axis=0)

    prob, boxes, max_scores, labels = postprocess_boxes(
        class_logits, box_regression, proposals, whm1, max_tile_n=512)
    pooled_feat = adaptive_avgpool_to_vec(features)
    jax.block_until_ready((prob, boxes, max_scores, labels, pooled_feat))

    # ---- sanity checks against the plain-JAX reference ----
    ref_prob, ref_boxes = _reference(class_logits, box_regression, proposals, whm1)
    assert jnp.allclose(prob, ref_prob, atol=5e-3), "softmax mismatch"
    assert jnp.allclose(boxes, ref_boxes, atol=1e-2), "decode/clip mismatch"
    fg = ref_prob[:, 1:]
    assert jnp.allclose(max_scores, jnp.max(fg, axis=1), atol=5e-3), "max score mismatch"
    assert jnp.array_equal(labels, jnp.argmax(fg, axis=1).astype(jnp.int32) + 1), \
        "labels mismatch"
    ref_pool = jnp.mean(features.astype(jnp.float32), axis=(2, 3))
    assert jnp.allclose(pooled_feat, ref_pool, atol=1e-4), "avgpool mismatch"

    # filter_results-style downstream glue (cheap XLA ops on the dense outputs)
    inds_all = prob > SCORE_THRESH                  # (N, C) bool, one VPU compare
    boxlist_bbox = boxes.reshape(-1, 4)             # (N*C, 4) as prepare_boxlist does
    boxlist_scores = prob.reshape(-1)               # (N*C,)
    assert inds_all.shape == (N, C)
    assert boxlist_bbox.shape == (N * C, 4) and boxlist_scores.shape == (N * C,)

    print("KERNEL_OK")
</pallas_src>

<mosaic_0001>
module attributes {stable_mosaic.version = 11 : i64} {
  func.func @_postproc_kernel(%arg0: i32, %arg1: memref<24x32xf32, #tpu.memory_space<vmem>>, %arg2: memref<24x128xf32, #tpu.memory_space<vmem>>, %arg3: memref<24x4xf32, #tpu.memory_space<vmem>>, %arg4: memref<24x2xf32, #tpu.memory_space<vmem>>, %arg5: memref<24x32xf32, #tpu.memory_space<vmem>>, %arg6: memref<24x128xf32, #tpu.memory_space<vmem>>, %arg7: memref<24x2xf32, #tpu.memory_space<vmem>>) attributes {dimension_semantics = [#tpu.dimension_semantics<parallel>], iteration_bounds = array<i64: 2>, scalar_prefetch = 0 : i64, scratch_operands = 0 : i64, tpu.core_type = #tpu.core_type<tc>, window_params = [{transform_indices = @transform_0, window_bounds = array<i64: 24, 32>}, {transform_indices = @transform_1, window_bounds = array<i64: 24, 128>}, {transform_indices = @transform_2, window_bounds = array<i64: 24, 4>}, {transform_indices = @transform_3, window_bounds = array<i64: 24, 2>}, {transform_indices = @transform_4, window_bounds = array<i64: 24, 32>}, {transform_indices = @transform_5, window_bounds = array<i64: 24, 128>}, {transform_indices = @transform_6, window_bounds = array<i64: 24, 2>}]} {
    %c0 = arith.constant 0 : index
    %c0_0 = arith.constant 0 : index
    %0 = vector.load %arg1[%c0, %c0_0] : memref<24x32xf32, #tpu.memory_space<vmem>>, vector<24x32xf32>
    %cst = arith.constant dense<0xFF800000> : vector<24xf32>
    %1 = vector.multi_reduction <maximumf>, %0, %cst [1] : vector<24x32xf32> to vector<24xf32>
    %2 = vector.shape_cast %1 : vector<24xf32> to vector<24x1xf32>
    %3 = vector.broadcast %2 : vector<24x1xf32> to vector<24x32xf32>
    %4 = arith.subf %0, %3 : vector<24x32xf32>
    %5 = math.exp %4 : vector<24x32xf32>
    %cst_1 = arith.constant dense<0.000000e+00> : vector<24xf32>
    %6 = vector.multi_reduction <add>, %5, %cst_1 [1] : vector<24x32xf32> to vector<24xf32>
    %7 = vector.shape_cast %6 : vector<24xf32> to vector<24x1xf32>
    %8 = tpu.reciprocal %7 {approx = true} : vector<24x1xf32> -> vector<24x1xf32>
    %9 = vector.broadcast %8 : vector<24x1xf32> to vector<24x32xf32>
    %10 = arith.mulf %5, %9 : vector<24x32xf32>
    %c0_2 = arith.constant 0 : index
    %c0_3 = arith.constant 0 : index
    %11 = vector.load %arg5[%c0_2, %c0_3] : memref<24x32xf32, #tpu.memory_space<vmem>>, vector<24x32xf32>
    tpu.vector_store %arg5[%c0_2, %c0_3], %10 {strides = array<i32>} : memref<24x32xf32, #tpu.memory_space<vmem>>, vector<24x32xf32>,
    %c0_4 = arith.constant 0 : index
    %c0_5 = arith.constant 0 : index
    %12 = vector.load %arg3[%c0_4, %c0_5] : memref<24x4xf32, #tpu.memory_space<vmem>>, vector<24x4xf32>
    %13 = vector.extract_strided_slice %12 {offsets = [0, 2], sizes = [24, 1], strides = [1, 1]} : vector<24x4xf32> to vector<24x1xf32>
    %14 = vector.extract_strided_slice %12 {offsets = [0, 0], sizes = [24, 1], strides = [1, 1]} : vector<24x4xf32> to vector<24x1xf32>
    %15 = arith.subf %13, %14 : vector<24x1xf32>
    %cst_6 = arith.constant 1.000000e+00 : f32
    %16 = vector.broadcast %cst_6 : f32 to vector<24x1xf32>
    %17 = arith.addf %15, %16 : vector<24x1xf32>
    %18 = vector.extract_strided_slice %12 {offsets = [0, 3], sizes = [24, 1], strides = [1, 1]} : vector<24x4xf32> to vector<24x1xf32>
    %19 = vector.extract_strided_slice %12 {offsets = [0, 1], sizes = [24, 1], strides = [1, 1]} : vector<24x4xf32> to vector<24x1xf32>
    %20 = arith.subf %18, %19 : vector<24x1xf32>
    %cst_7 = arith.constant 1.000000e+00 : f32
    %21 = vector.broadcast %cst_7 : f32 to vector<24x1xf32>
    %22 = arith.addf %20, %21 : vector<24x1xf32>
    %23 = vector.extract_strided_slice %12 {offsets = [0, 0], sizes = [24, 1], strides = [1, 1]} : vector<24x4xf32> to vector<24x1xf32>
    %cst_8 = arith.constant 5.000000e-01 : f32
    %24 = vector.broadcast %cst_8 : f32 to vector<24x1xf32>
    %25 = arith.mulf %24, %17 : vector<24x1xf32>
    %26 = arith.addf %23, %25 : vector<24x1xf32>
    %27 = vector.extract_strided_slice %12 {offsets = [0, 1], sizes = [24, 1], strides = [1, 1]} : vector<24x4xf32> to vector<24x1xf32>
    %cst_9 = arith.constant 5.000000e-01 : f32
    %28 = vector.broadcast %cst_9 : f32 to vector<24x1xf32>
    %29 = arith.mulf %28, %22 : vector<24x1xf32>
    %30 = arith.addf %27, %29 : vector<24x1xf32>
    %c0_10 = arith.constant 0 : index
    %c0_11 = arith.constant 0 : index
    %31 = vector.load %arg2[%c0_10, %c0_11] : memref<24x128xf32, #tpu.memory_space<vmem>>, vector<24x128xf32>
    %32 = tpu.iota {dimensions = array<i32: 1>} : vector<24x128xi32>
    %c2_i32 = arith.constant 2 : i32
    %c0_i32 = arith.constant 0 : i32
    %33 = arith.cmpi eq, %c2_i32, %c0_i32 : i32
    %c1_i32 = arith.constant 1 : i32
    %34 = arith.select %33, %c1_i32, %c2_i32 : i32
    %35 = vector.broadcast %34 : i32 to vector<24x128xi32>
    %36 = arith.remsi %32, %35 : vector<24x128xi32>
    %c0_i32_12 = arith.constant 0 : i32
    %37 = vector.broadcast %c0_i32_12 : i32 to vector<24x128xi32>
    %38 = arith.cmpi ne, %36, %37 : vector<24x128xi32>
    %c0_i32_13 = arith.constant 0 : i32
    %39 = vector.broadcast %c0_i32_13 : i32 to vector<24x128xi32>
    %40 = arith.cmpi slt, %36, %39 : vector<24x128xi32>
    %c0_i32_14 = arith.constant 0 : i32
    %41 = arith.cmpi slt, %34, %c0_i32_14 : i32
    %42 = vector.broadcast %41 : i1 to vector<24x128xi1>
    %43 = vector.broadcast %42 : vector<24x128xi1> to vector<24x128xi1>
    %44 = arith.xori %40, %43 : vector<24x128xi1>
    %45 = arith.andi %44, %38 : vector<24x128xi1>
    %46 = vector.broadcast %34 : i32 to vector<24x128xi32>
    %47 = arith.addi %36, %46 : vector<24x128xi32>
    %48 = arith.select %45, %47, %36 : vector<24x128xi1>, vector<24x128xi32>
    %c0_i32_15 = arith.constant 0 : i32
    %49 = vector.broadcast %c0_i32_15 : i32 to vector<24x128xi32>
    %50 = arith.cmpi eq, %48, %49 : vector<24x128xi32>
    %c4_i32 = arith.constant 4 : i32
    %c0_i32_16 = arith.constant 0 : i32
    %51 = arith.cmpi eq, %c4_i32, %c0_i32_16 : i32
    %c1_i32_17 = arith.constant 1 : i32
    %52 = arith.select %51, %c1_i32_17, %c4_i32 : i32
    %53 = vector.broadcast %52 : i32 to vector<24x128xi32>
    %54 = arith.remsi %32, %53 : vector<24x128xi32>
    %c0_i32_18 = arith.constant 0 : i32
    %55 = vector.broadcast %c0_i32_18 : i32 to vector<24x128xi32>
    %56 = arith.cmpi ne, %54, %55 : vector<24x128xi32>
    %c0_i32_19 = arith.constant 0 : i32
    %57 = vector.broadcast %c0_i32_19 : i32 to vector<24x128xi32>
    %58 = arith.cmpi slt, %54, %57 : vector<24x128xi32>
    %c0_i32_20 = arith.constant 0 : i32
    %59 = arith.cmpi slt, %52, %c0_i32_20 : i32
    %60 = vector.broadcast %59 : i1 to vector<24x128xi1>
    %61 = vector.broadcast %60 : vector<24x128xi1> to vector<24x128xi1>
    %62 = arith.xori %58, %61 : vector<24x128xi1>
    %63 = arith.andi %62, %56 : vector<24x128xi1>
    %64 = vector.broadcast %52 : i32 to vector<24x128xi32>
    %65 = arith.addi %54, %64 : vector<24x128xi32>
    %66 = arith.select %63, %65, %54 : vector<24x128xi1>, vector<24x128xi32>
    %c2_i32_21 = arith.constant 2 : i32
    %67 = vector.broadcast %c2_i32_21 : i32 to vector<24x128xi32>
    %68 = arith.cmpi slt, %66, %67 : vector<24x128xi32>
    %c2_i32_22 = arith.constant 2 : i32
    %69 = tpu.dynamic_rotate %31 by %c2_i32_22 dim 1 : vector<24x128xf32>, i32 -> vector<24x128xf32>
    %c126_i32 = arith.constant 126 : i32
    %70 = tpu.dynamic_rotate %31 by %c126_i32 dim 1 : vector<24x128xf32>, i32 -> vector<24x128xf32>
    %71 = arith.select %68, %31, %69 : vector<24x128xi1>, vector<24x128xf32>
    %72 = arith.select %68, %70, %31 : vector<24x128xi1>, vector<24x128xf32>
    %73 = vector.shape_cast %17 : vector<24x1xf32> to vector<24x1xf32>
    %74 = vector.broadcast %73 : vector<24x1xf32> to vector<24x128xf32>
    %75 = vector.shape_cast %22 : vector<24x1xf32> to vector<24x1xf32>
    %76 = vector.broadcast %75 : vector<24x1xf32> to vector<24x128xf32>
    %77 = arith.select %50, %74, %76 : vector<24x128xi1>, vector<24x128xf32>
    %78 = vector.shape_cast %26 : vector<24x1xf32> to vector<24x1xf32>
    %79 = vector.broadcast %78 : vector<24x1xf32> to vector<24x128xf32>
    %80 = vector.shape_cast %30 : vector<24x1xf32> to vector<24x1xf32>
    %81 = vector.broadcast %80 : vector<24x1xf32> to vector<24x128xf32>
    %82 = arith.select %50, %79, %81 : vector<24x128xi1>, vector<24x128xf32>
    %cst_23 = arith.constant 1.000000e-01 : f32
    %83 = vector.broadcast %cst_23 : f32 to vector<24x128xf32>
    %84 = arith.mulf %71, %83 : vector<24x128xf32>
    %85 = arith.mulf %84, %77 : vector<24x128xf32>
    %86 = arith.addf %85, %82 : vector<24x128xf32>
    %cst_24 = arith.constant 2.000000e-01 : f32
    %87 = vector.broadcast %cst_24 : f32 to vector<24x128xf32>
    %88 = arith.mulf %72, %87 : vector<24x128xf32>
    %cst_25 = arith.constant 4.13516665 : f32
    %89 = vector.broadcast %cst_25 : f32 to vector<24x128xf32>
    %90 = arith.minimumf %88, %89 : vector<24x128xf32>
    %91 = math.exp %90 : vector<24x128xf32>
    %cst_26 = arith.constant 5.000000e-01 : f32
    %92 = vector.broadcast %cst_26 : f32 to vector<24x128xf32>
    %93 = arith.mulf %92, %91 : vector<24x128xf32>
    %94 = arith.mulf %93, %77 : vector<24x128xf32>
    %95 = arith.subf %86, %94 : vector<24x128xf32>
    %96 = arith.addf %86, %94 : vector<24x128xf32>
    %cst_27 = arith.constant 1.000000e+00 : f32
    %97 = vector.broadcast %cst_27 : f32 to vector<24x128xf32>
    %98 = arith.subf %96, %97 : vector<24x128xf32>
    %99 = arith.select %68, %95, %98 : vector<24x128xi1>, vector<24x128xf32>
    %c0_28 = arith.constant 0 : index
    %c0_29 = arith.constant 0 : index
    %100 = vector.load %arg4[%c0_28, %c0_29] : memref<24x2xf32, #tpu.memory_space<vmem>>, vector<24x1xf32>
    %c0_30 = arith.constant 0 : index
    %c1 = arith.constant 1 : index
    %101 = vector.load %arg4[%c0_30, %c1] : memref<24x2xf32, #tpu.memory_space<vmem>>, vector<24x1xf32>
    %102 = vector.shape_cast %100 : vector<24x1xf32> to vector<24x1xf32>
    %103 = vector.broadcast %102 : vector<24x1xf32> to vector<24x128xf32>
    %104 = vector.shape_cast %101 : vector<24x1xf32> to vector<24x1xf32>
    %105 = vector.broadcast %104 : vector<24x1xf32> to vector<24x128xf32>
    %106 = arith.select %50, %103, %105 : vector<24x128xi1>, vector<24x128xf32>
    %cst_31 = arith.constant 0.000000e+00 : f32
    %107 = vector.broadcast %cst_31 : f32 to vector<24x128xf32>
    %108 = arith.maximumf %107, %99 : vector<24x128xf32>
    %109 = arith.minimumf %106, %108 : vector<24x128xf32>
    %c0_32 = arith.constant 0 : index
    %c0_33 = arith.constant 0 : index
    %110 = vector.load %arg6[%c0_32, %c0_33] : memref<24x128xf32, #tpu.memory_space<vmem>>, vector<24x128xf32>
    tpu.vector_store %arg6[%c0_32, %c0_33], %109 {strides = array<i32>} : memref<24x128xf32, #tpu.memory_space<vmem>>, vector<24x128xf32>,
    %111 = tpu.iota {dimensions = array<i32: 1>} : vector<24x32xi32>
    %c0_i32_34 = arith.constant 0 : i32
    %112 = vector.broadcast %c0_i32_34 : i32 to vector<24x32xi32>
    %113 = arith.cmpi sgt, %111, %112 : vector<24x32xi32>
    %cst_35 = arith.constant -1.000000e+00 : f32
    %114 = vector.broadcast %cst_35 : f32 to vector<24x32xf32>
    %115 = arith.select %113, %10, %114 : vector<24x32xi1>, vector<24x32xf32>
    %cst_36 = arith.constant dense<0xFF800000> : vector<24xf32>
    %116 = vector.multi_reduction <maximumf>, %115, %cst_36 [1] : vector<24x32xf32> to vector<24xf32>
    %117 = vector.shape_cast %116 : vector<24xf32> to vector<24x1xf32>
    %118 = vector.broadcast %117 : vector<24x1xf32> to vector<24x32xf32>
    %119 = arith.cmpf oeq, %115, %118 : vector<24x32xf32>
    %c32_i32 = arith.constant 32 : i32
    %120 = vector.broadcast %c32_i32 : i32 to vector<24x32xi32>
    %121 = arith.select %119, %111, %120 : vector<24x32xi1>, vector<24x32xi32>
    %cst_37 = arith.constant dense<2147483647> : vector<24xi32>
    %122 = vector.multi_reduction <minsi>, %121, %cst_37 [1] : vector<24x32xi32> to vector<24xi32>
    %123 = vector.shape_cast %122 : vector<24xi32> to vector<24x1xi32>
    %124 = tpu.iota {dimensions = array<i32: 1>} : vector<24x2xi32>
    %c0_i32_38 = arith.constant 0 : i32
    %125 = vector.broadcast %c0_i32_38 : i32 to vector<24x2xi32>
    %126 = arith.cmpi eq, %124, %125 : vector<24x2xi32>
    %127 = arith.sitofp %123 : vector<24x1xi32> to vector<24x1xf32>
    %128 = vector.shape_cast %117 : vector<24x1xf32> to vector<24x1xf32>
    %129 = vector.broadcast %128 : vector<24x1xf32> to vector<24x2xf32>
    %130 = vector.shape_cast %127 : vector<24x1xf32> to vector<24x1xf32>
    %131 = vector.broadcast %130 : vector<24x1xf32> to vector<24x2xf32>
    %132 = arith.select %126, %129, %131 : vector<24x2xi1>, vector<24x2xf32>
    %c0_39 = arith.constant 0 : index
    %c0_40 = arith.constant 0 : index
    %133 = vector.load %arg7[%c0_39, %c0_40] : memref<24x2xf32, #tpu.memory_space<vmem>>, vector<24x2xf32>
    tpu.vector_store %arg7[%c0_39, %c0_40], %132 {strides = array<i32>} : memref<24x2xf32, #tpu.memory_space<vmem>>, vector<24x2xf32>,
    return
  }
  func.func @transform_0(%arg0: i32) -> (i32, i32) {
    %c0_i32 = arith.constant 0 : i32
    %c0_i32_0 = arith.constant 0 : i32
    return %arg0, %c0_i32 : i32, i32
  }
  func.func @transform_1(%arg0: i32) -> (i32, i32) {
    %c0_i32 = arith.constant 0 : i32
    %c0_i32_0 = arith.constant 0 : i32
    return %arg0, %c0_i32 : i32, i32
  }
  func.func @transform_2(%arg0: i32) -> (i32, i32) {
    %c0_i32 = arith.constant 0 : i32
    %c0_i32_0 = arith.constant 0 : i32
    return %arg0, %c0_i32 : i32, i32
  }
  func.func @transform_3(%arg0: i32) -> (i32, i32) {
    %c0_i32 = arith.constant 0 : i32
    %c0_i32_0 = arith.constant 0 : i32
    return %arg0, %c0_i32 : i32, i32
  }
  func.func @transform_4(%arg0: i32) -> (i32, i32) {
    %c0_i32 = arith.constant 0 : i32
    %c0_i32_0 = arith.constant 0 : i32
    return %arg0, %c0_i32 : i32, i32
  }
  func.func @transform_5(%arg0: i32) -> (i32, i32) {
    %c0_i32 = arith.constant 0 : i32
    %c0_i32_0 = arith.constant 0 : i32
    return %arg0, %c0_i32 : i32, i32
  }
  func.func @transform_6(%arg0: i32) -> (i32, i32) {
    %c0_i32 = arith.constant 0 : i32
    %c0_i32_0 = arith.constant 0 : i32
    return %arg0, %c0_i32 : i32, i32
  }
}

</mosaic_0001>

<llo_original>
// kernel: tpu_custom_call.1
$region0: #{tpu_custom_call.1}
  #allocation0 [shape = 'u32[]', space=smem, size = 0x4, offset = 0x4, fixed_abs, tag = 'smem constant byte address 0x4 - core index']
  #allocation1 [shape = 'u32[144,128]{1,0:T(1,128)}', space=vmem, size = 0x12000, scoped, tag = 'internal scratch']
  %s0 = inlined_call_operand.vmem [shape: f32[48,32], index: 0, kind: input, shape index: {}]
  %s1 = inlined_call_operand.vmem [shape: f32[48,128], index: 1, kind: input, shape index: {}]
  %s2 = inlined_call_operand.vmem [shape: f32[48,4], index: 2, kind: input, shape index: {}]
  %s3 = inlined_call_operand.vmem [shape: f32[48,2], index: 3, kind: input, shape index: {}]
  %s4 = inlined_call_operand.vmem [shape: f32[48,32], index: 4, kind: output, shape index: {0}]
  %s5 = inlined_call_operand.hbm [shape: f32[48,128], index: 5, kind: output, shape index: {1}]
  %s6 = inlined_call_operand.vmem [shape: f32[48,2], index: 6, kind: output, shape index: {2}]
  %7 = xla_tuple %s4, %s5, %s6
  %s8 = sld [smem:[#allocation0]]
  $region65: #{tpu_custom_call.1} parent=0
    _
  %s10 = ssub.s32 1, %s8
  %s11 = scalar_select 0, %s10, %s8
  $region1: #{tpu_custom_call.1} parent=0
    #allocation2 [shape = 'u8[24576]{0}', space=vmem, size = 0x6000, scoped, tag = 'output window, operand 1']
    #allocation3 [shape = 's32[2]{0}', space=sflag, size = 0x8, scoped, tag = 'scoped memory for tpu_custom_call.1']
    %12 = vsyncpa [#allocation3], 0
    %s13 = scalar_lea.sflag [#allocation3], 1
    %14 = vsyncpa %s13, 0
    loop: start=0, step=1, limit=4
    $region2: #{tpu_custom_call.1} parent=1 // loop_pre_header
      _
    $region3: #{tpu_custom_call.1} parent=1 // loop_header
      %s16 = sphi 0, %s20
      %p17 = scmp.ge.s32.totalorder %s16, 4
      %s26 = sphi 0, %s28
      %s29 = sphi 0, %s26
      %s30 = sphi 0, %s29
      %s46 = sphi 0, %s30
      %s52 = sphi 0, %s54
      %s55 = sphi 0, %s52
      %s56 = sphi 0, %s55
      %s72 = sphi 0, %s56
      %s78 = sphi 0, %s80
      %s81 = sphi 0, %s78
      %s82 = sphi 0, %s81
      %s98 = sphi 0, %s82
      %s104 = sphi 0, %s106
      %s107 = sphi 0, %s104
      %s108 = sphi 0, %s107
      %s124 = sphi 0, %s108
      %s130 = sphi 0, %s132
      %s133 = sphi 0, %s130
      %s134 = sphi 0, %s133
      %s150 = sphi 0, %s134
      %s156 = sphi 0, %s158
      %s159 = sphi 0, %s156
      %s160 = sphi 0, %s159
      %s176 = sphi 0, %s160
      %s182 = sphi 0, %s184
      %s185 = sphi 0, %s182
      %s186 = sphi 0, %s185
      %s202 = sphi 0, %s186
    $region4: #{tpu_custom_call.1} parent=1 // loop_header_branch
      %19 = sbr.rel (%p17) target = $region8
    $region5: #{tpu_custom_call.1} parent=1 // loop_body
      %s21 = ssub.s32 %s16, 1
      %s22 = ssub.s32 %s16, 2
      %s23 = sadd.s32 %s16, 1
      %s24 = ssub.s32 %s16, %s23
      %p25 = scmp.eq.s32.totalorder %s24, 0
      %s27 = sadd.s32 %s26, 1
      %s28 = scalar_select %p25, %s26, %s27
      %p31 = pneg %p25
      %p32 = scmp.eq.s32.totalorder %s16, 1
      %p33 = por %p31, %p32
      %p34 = scmp.ne.s32.totalorder %s26, %s29
      %p35 = scmp.eq.s32.totalorder %s16, 0
      %p36 = por %p34, %p35
      %p37 = scmp.ne.s32.totalorder %s26, %s29
      %p38 = scmp.eq.s32.totalorder %s21, 1
      %p39 = por %p37, %p38
      %p40 = scmp.ne.s32.totalorder %s29, %s30
      %p41 = scmp.eq.s32.totalorder %s21, 0
      %p42 = por %p40, %p41
      %p43 = scmp.ne.s32.totalorder %s29, %s30
      %p44 = scmp.eq.s32.totalorder %s22, 1
      %p45 = por %p43, %p44
      %p47 = scmp.ne.s32.totalorder %s30, %s46
      %p48 = scmp.eq.s32.totalorder %s22, 0
      %p49 = por %p47, %p48
      %s50 = ssub.s32 %s16, %s23
      %p51 = scmp.eq.s32.totalorder %s50, 0
      %s53 = sadd.s32 %s52, 1
      %s54 = scalar_select %p51, %s52, %s53
      %p57 = pneg %p51
      %p58 = scmp.eq.s32.totalorder %s16, 1
      %p59 = por %p57, %p58
      %p60 = scmp.ne.s32.totalorder %s52, %s55
      %p61 = scmp.eq.s32.totalorder %s16, 0
      %p62 = por %p60, %p61
      %p63 = scmp.ne.s32.totalorder %s52, %s55
      %p64 = scmp.eq.s32.totalorder %s21, 1
      %p65 = por %p63, %p64
      %p66 = scmp.ne.s32.totalorder %s55, %s56
      %p67 = scmp.eq.s32.totalorder %s21, 0
      %p68 = por %p66, %p67
      %p69 = scmp.ne.s32.totalorder %s55, %s56
      %p70 = scmp.eq.s32.totalorder %s22, 1
      %p71 = por %p69, %p70
      %p73 = scmp.ne.s32.totalorder %s56, %s72
      %p74 = scmp.eq.s32.totalorder %s22, 0
      %p75 = por %p73, %p74
      %s76 = ssub.s32 %s16, %s23
      %p77 = scmp.eq.s32.totalorder %s76, 0
      %s79 = sadd.s32 %s78, 1
      %s80 = scalar_select %p77, %s78, %s79
      %p83 = pneg %p77
      %p84 = scmp.eq.s32.totalorder %s16, 1
      %p85 = por %p83, %p84
      %p86 = scmp.ne.s32.totalorder %s78, %s81
      %p87 = scmp.eq.s32.totalorder %s16, 0
      %p88 = por %p86, %p87
      %p89 = scmp.ne.s32.totalorder %s78, %s81
      %p90 = scmp.eq.s32.totalorder %s21, 1
      %p91 = por %p89, %p90
      %p92 = scmp.ne.s32.totalorder %s81, %s82
      %p93 = scmp.eq.s32.totalorder %s21, 0
      %p94 = por %p92, %p93
      %p95 = scmp.ne.s32.totalorder %s81, %s82
      %p96 = scmp.eq.s32.totalorder %s22, 1
      %p97 = por %p95, %p96
      %p99 = scmp.ne.s32.totalorder %s82, %s98
      %p100 = scmp.eq.s32.totalorder %s22, 0
      %p101 = por %p99, %p100
      %s102 = ssub.s32 %s16, %s23
      %p103 = scmp.eq.s32.totalorder %s102, 0
      %s105 = sadd.s32 %s104, 1
      %s106 = scalar_select %p103, %s104, %s105
      %p109 = pneg %p103
      %p110 = scmp.eq.s32.totalorder %s16, 1
      %p111 = por %p109, %p110
      %p112 = scmp.ne.s32.totalorder %s104, %s107
      %p113 = scmp.eq.s32.totalorder %s16, 0
      %p114 = por %p112, %p113
      %p115 = scmp.ne.s32.totalorder %s104, %s107
      %p116 = scmp.eq.s32.totalorder %s21, 1
      %p117 = por %p115, %p116
      %p118 = scmp.ne.s32.totalorder %s107, %s108
      %p119 = scmp.eq.s32.totalorder %s21, 0
      %p120 = por %p118, %p119
      %p121 = scmp.ne.s32.totalorder %s107, %s108
      %p122 = scmp.eq.s32.totalorder %s22, 1
      %p123 = por %p121, %p122
      %p125 = scmp.ne.s32.totalorder %s108, %s124
      %p126 = scmp.eq.s32.totalorder %s22, 0
      %p127 = por %p125, %p126
      %s128 = ssub.s32 %s16, %s23
      %p129 = scmp.eq.s32.totalorder %s128, 0
      %s131 = sadd.s32 %s130, 1
      %s132 = scalar_select %p129, %s130, %s131
      %p135 = pneg %p129
      %p136 = scmp.eq.s32.totalorder %s16, 1
      %p137 = por %p135, %p136
      %p138 = scmp.ne.s32.totalorder %s130, %s133
      %p139 = scmp.eq.s32.totalorder %s16, 0
      %p140 = por %p138, %p139
      %p141 = scmp.ne.s32.totalorder %s130, %s133
      %p142 = scmp.eq.s32.totalorder %s21, 1
      %p143 = por %p141, %p142
      %p144 = scmp.ne.s32.totalorder %s133, %s134
      %p145 = scmp.eq.s32.totalorder %s21, 0
      %p146 = por %p144, %p145
      %p147 = scmp.ne.s32.totalorder %s133, %s134
      %p148 = scmp.eq.s32.totalorder %s22, 1
      %p149 = por %p147, %p148
      %p151 = scmp.ne.s32.totalorder %s134, %s150
      %p152 = scmp.eq.s32.totalorder %s22, 0
      %p153 = por %p151, %p152
      %s154 = ssub.s32 %s16, %s23
      %p155 = scmp.eq.s32.totalorder %s154, 0
      %s157 = sadd.s32 %s156, 1
      %s158 = scalar_select %p155, %s156, %s157
      %p161 = pneg %p155
      %p162 = scmp.eq.s32.totalorder %s16, 1
      %p163 = por %p161, %p162
      %p164 = scmp.ne.s32.totalorder %s156, %s159
      %p165 = scmp.eq.s32.totalorder %s16, 0
      %p166 = por %p164, %p165
      %p167 = scmp.ne.s32.totalorder %s156, %s159
      %p168 = scmp.eq.s32.totalorder %s21, 1
      %p169 = por %p167, %p168
      %p170 = scmp.ne.s32.totalorder %s159, %s160
      %p171 = scmp.eq.s32.totalorder %s21, 0
      %p172 = por %p170, %p171
      %p173 = scmp.ne.s32.totalorder %s159, %s160
      %p174 = scmp.eq.s32.totalorder %s22, 1
      %p175 = por %p173, %p174
      %p177 = scmp.ne.s32.totalorder %s160, %s176
      %p178 = scmp.eq.s32.totalorder %s22, 0
      %p179 = por %p177, %p178
      %s180 = ssub.s32 %s16, %s23
      %p181 = scmp.eq.s32.totalorder %s180, 0
      %s183 = sadd.s32 %s182, 1
      %s184 = scalar_select %p181, %s182, %s183
      %p187 = pneg %p181
      %p188 = scmp.eq.s32.totalorder %s16, 1
      %p189 = por %p187, %p188
      %p190 = scmp.ne.s32.totalorder %s182, %s185
      %p191 = scmp.eq.s32.totalorder %s16, 0
      %p192 = por %p190, %p191
      %p193 = scmp.ne.s32.totalorder %s182, %s185
      %p194 = scmp.eq.s32.totalorder %s21, 1
      %p195 = por %p193, %p194
      %p196 = scmp.ne.s32.totalorder %s185, %s186
      %p197 = scmp.eq.s32.totalorder %s21, 0
      %p198 = por %p196, %p197
      %p199 = scmp.ne.s32.totalorder %s185, %s186
      %p200 = scmp.eq.s32.totalorder %s22, 1
      %p201 = por %p199, %p200
      %p203 = scmp.ne.s32.totalorder %s186, %s202
      %p204 = scmp.eq.s32.totalorder %s22, 0
      %p205 = por %p203, %p204
      %p206 = scmp.le.s32.totalorder 1, %s16
      %p207 = scmp.lt.s32.totalorder %s16, 3
      %p208 = pnand %p206, %p207
      %p209 = pneg %p208
      // Predicated region
      $region9: #{tpu_custom_call.1} parent=5 // pred_check
        _
      $region10: #{tpu_custom_call.1} parent=5 // pred_check_branch
        %211 = sbr.rel (%p208) target = $region12
      $region11: #{tpu_custom_call.1} parent=5 // pred_region
        %s212 = ssub.s32 %s16, 1
      $region12: #{tpu_custom_call.1} parent=5 // pred_fallthru
        _
      %p213 = scmp.lt.s32.totalorder %s16, 2
      // Predicated region
      $region13: #{tpu_custom_call.1} parent=5 // pred_check
        %p214 = pneg %p213
      $region14: #{tpu_custom_call.1} parent=5 // pred_check_branch
        %216 = sbr.rel (%p214) target = $region16
      $region15: #{tpu_custom_call.1} parent=5 // pred_region
        // Predicated region
        $region17: #{tpu_custom_call.1} parent=15 // pred_check
          %p217 = pneg %p36
        $region18: #{tpu_custom_call.1} parent=15 // pred_check_branch
          %219 = sbr.rel (%p217) target = $region20
        $region19: #{tpu_custom_call.1} parent=15 // pred_region
          %s220 = smul.u32 3, %s16
          %p221 = scmp.lt.s32.totalorder %s220, 5
          %s222 = scalar_select %p221, %s220, 5
          %s223 = smul.addr %s222, 8
          %s224 = scalar_lea.vmem %s0, %s223
          %s225 = smul.u32 3, %s16
        $region20: #{tpu_custom_call.1} parent=15 // pred_fallthru
          _
        // Predicated region
        $region21: #{tpu_custom_call.1} parent=15 // pred_check
          %p226 = pneg %p62
        $region22: #{tpu_custom_call.1} parent=15 // pred_check_branch
          %228 = sbr.rel (%p226) target = $region24
        $region23: #{tpu_custom_call.1} parent=15 // pred_region
          %s229 = smul.u32 3, %s16
          %p230 = scmp.lt.s32.totalorder %s229, 5
          %s231 = scalar_select %p230, %s229, 5
          %s232 = smul.addr %s231, 8
          %s233 = scalar_lea.vmem %s1, %s232
          %s234 = smul.u32 3, %s16
        $region24: #{tpu_custom_call.1} parent=15 // pred_fallthru
          _
        // Predicated region
        $region25: #{tpu_custom_call.1} parent=15 // pred_check
          %p235 = pneg %p88
        $region26: #{tpu_custom_call.1} parent=15 // pred_check_branch
          %237 = sbr.rel (%p235) target = $region28
        $region27: #{tpu_custom_call.1} parent=15 // pred_region
          %s238 = smul.u32 3, %s16
          %p239 = scmp.lt.s32.totalorder %s238, 5
          %s240 = scalar_select %p239, %s238, 5
          %s241 = smul.addr %s240, 8
          %s242 = scalar_lea.vmem %s2, %s241
          %s243 = smul.u32 3, %s16
        $region28: #{tpu_custom_call.1} parent=15 // pred_fallthru
          _
        // Predicated region
        $region29: #{tpu_custom_call.1} parent=15 // pred_check
          %p244 = pneg %p114
        $region30: #{tpu_custom_call.1} parent=15 // pred_check_branch
          %246 = sbr.rel (%p244) target = $region32
        $region31: #{tpu_custom_call.1} parent=15 // pred_region
          %s247 = smul.u32 3, %s16
          %p248 = scmp.lt.s32.totalorder %s247, 5
          %s249 = scalar_select %p248, %s247, 5
          %s250 = smul.addr %s249, 8
          %s251 = scalar_lea.vmem %s3, %s250
          %s252 = smul.u32 3, %s16
        $region32: #{tpu_custom_call.1} parent=15 // pred_fallthru
          _
      $region16: #{tpu_custom_call.1} parent=5 // pred_fallthru
        _
      %p253 = scmp.le.s32.totalorder 1, %s16
      %p254 = scmp.lt.s32.totalorder %s16, 3
      %p255 = pnand %p253, %p254
      %p256 = pneg %p255
      // Predicated region
      $region33: #{tpu_custom_call.1} parent=5 // pred_check
        _
      $region34: #{tpu_custom_call.1} parent=5 // pred_check_branch
        %258 = sbr.rel (%p255) target = $region36
      $region35: #{tpu_custom_call.1} parent=5 // pred_region
        %s259 = ssub.s32 %s16, 1
        %s260 = smul.u32 3, %s21
        %p261 = scmp.lt.s32.totalorder %s260, 5
        %s262 = scalar_select %p261, %s260, 5
        %s263 = smul.addr %s262, 8
        %s264 = scalar_lea.vmem %s0, %s263
        %p265 = pneg %p42
        %p266 = pneg %p39
        %s267 = smul.u32 3, %s21
        %p268 = scmp.lt.s32.totalorder %s267, 5
        %s269 = scalar_select %p268, %s267, 5
        %s270 = smul.addr %s269, 8
        %s271 = scalar_lea.vmem %s1, %s270
        %p272 = pneg %p68
        %p273 = pneg %p65
        %s274 = smul.u32 3, %s21
        %p275 = scmp.lt.s32.totalorder %s274, 5
        %s276 = scalar_select %p275, %s274, 5
        %s277 = smul.addr %s276, 8
        %s278 = scalar_lea.vmem %s2, %s277
        %p279 = pneg %p94
        %p280 = pneg %p91
        %s281 = smul.u32 3, %s21
        %p282 = scmp.lt.s32.totalorder %s281, 5
        %s283 = scalar_select %p282, %s281, 5
        %s284 = smul.addr %s283, 8
        %s285 = scalar_lea.vmem %s3, %s284
        %p286 = pneg %p120
        %p287 = pneg %p117
        %p288 = pneg %p146
        %p289 = pneg %p143
        %s290 = smul.u32 3, %s21
        %p291 = scmp.lt.s32.totalorder %s290, 5
        %s292 = scalar_select %p291, %s290, 5
        %s293 = smul.addr %s292, 8
        %s294 = scalar_lea.vmem %s4, %s293
        %p295 = pneg %p172
        %p296 = pneg %p169
        %s297 = sand.u32 %s159, 1
        %s298 = scalar_lea.sflag [#allocation3], %s297
        %s299 = sand.u32 %s159, 1
        %s300 = smul.addr %s299, 24
        %s301 = scalar_lea.vmem [#allocation2], %s300
        %p302 = pneg %p198
        %p303 = pneg %p195
        %s304 = smul.u32 3, %s21
        %p305 = scmp.lt.s32.totalorder %s304, 5
        %s306 = scalar_select %p305, %s304, 5
        %s307 = smul.addr %s306, 8
        %s308 = scalar_lea.vmem %s6, %s307
        %s309 = smul.u32 3, %s21
        %p310 = scmp.lt.s32.totalorder %s309, 5
        %s311 = scalar_select %p310, %s309, 5
        %s312 = smul.addr %s311, 8
        %s313 = scalar_lea.vmem %s0, %s312
        %s314 = smul.u32 3, %s21
        %s315 = smul.u32 3, %s21
        %p316 = scmp.lt.s32.totalorder %s315, 5
        %s317 = scalar_select %p316, %s315, 5
        %s318 = smul.addr %s317, 8
        %s319 = scalar_lea.vmem %s1, %s318
        %s320 = smul.u32 3, %s21
        %s321 = smul.u32 3, %s21
        %p322 = scmp.lt.s32.totalorder %s321, 5
        %s323 = scalar_select %p322, %s321, 5
        %s324 = smul.addr %s323, 8
        %s325 = scalar_lea.vmem %s2, %s324
        %s326 = smul.u32 3, %s21
        %s327 = smul.u32 3, %s21
        %p328 = scmp.lt.s32.totalorder %s327, 5
        %s329 = scalar_select %p328, %s327, 5
        %s330 = smul.addr %s329, 8
        %s331 = scalar_lea.vmem %s3, %s330
        %s332 = smul.u32 3, %s21
        %s333 = smul.u32 3, %s21
        %p334 = scmp.lt.s32.totalorder %s333, 5
        %s335 = scalar_select %p334, %s333, 5
        %s336 = smul.addr %s335, 8
        %s337 = scalar_lea.vmem %s4, %s336
        %s338 = smul.u32 3, %s21
        %s339 = smul.u32 3, %s21
        %s340 = smul.u32 3, %s21
        %p341 = scmp.lt.s32.totalorder %s340, 5
        %s342 = scalar_select %p341, %s340, 5
        %s343 = smul.addr %s342, 8
        %s344 = scalar_lea.vmem %s6, %s343
        %s345 = smul.u32 3, %s21
        %v346 = vld [vmem:[%s313] sm:$0xff]
        %v347 = vld [vmem:[%s313 + $0x8] sm:$0xff]
        %v348 = vld [vmem:[%s313 + $0x10] sm:$0xff]
        %vm349 = vcmask 261120
        %v350 = vsel %vm349, %v346, -inf
        %351 = vmax.xlane.f32.xlu0 %v350
        %v352 = vpop.xlane.xlu0 %351
        %v353 = vsel %vm349, %v347, -inf
        %354 = vmax.xlane.f32.xlu0 %v353
        %v355 = vpop.xlane.xlu0 %354
        %v356 = vsel %vm349, %v348, -inf
        %357 = vmax.xlane.f32.xlu0 %v356
        %v358 = vpop.xlane.xlu0 %357
        %v359 = vsub.f32 %v346, %v352
        %v360 = vsub.f32 %v347, %v355
        %v361 = vsub.f32 %v348, %v358
        %v362 = vmul.f32 %v359, 1.442695
        %v363 = vpow.pop %v362
        %v364 = vmul.f32 %v360, 1.442695
        %v365 = vpow.pop %v364
        %v366 = vmul.f32 %v361, 1.442695
        %v367 = vpow.pop %v366
        %v368 = vsel %vm349, %v363, 0.0
        %369 = vadd.xlane.f32.xlu0 %v368
        %v370 = vpop.xlane.xlu0 %369
        %v371 = vsel %vm349, %v365, 0.0
        %372 = vadd.xlane.f32.xlu0 %v371
        %v373 = vpop.xlane.xlu0 %372
        %v374 = vsel %vm349, %v367, 0.0
        %375 = vadd.xlane.f32.xlu0 %v374
        %v376 = vpop.xlane.xlu0 %375
        %v377 = vrcp.pop %v370
        %v378 = vrcp.pop %v373
        %v379 = vrcp.pop %v376
        %v380 = vmul.f32 %v363, %v377
        %v381 = vmul.f32 %v365, %v378
        %v382 = vmul.f32 %v367, %v379
        %383 = vst.msk [vmem:[%s337] sm:$0xff] %vm349, %v380
        %384 = vst.msk [vmem:[%s337 + $0x8] sm:$0xff] %vm349, %v381
        %385 = vst.msk [vmem:[%s337 + $0x10] sm:$0xff] %vm349, %v382
        %v386 = vld [vmem:[%s325] sm:$0xff]
        %v387 = vld [vmem:[%s325 + $0x8] sm:$0xff]
        %v388 = vld [vmem:[%s325 + $0x10] sm:$0xff]
        %392 = vrot.lane.b32.xlu0 %v386, 2
        %v393 = vpop.permute.xlu0 %392
        %394 = vrot.lane.b32.xlu0 %v387, 2
        %v395 = vpop.permute.xlu0 %394
        %396 = vrot.lane.b32.xlu0 %v388, 2
        %v397 = vpop.permute.xlu0 %396
        %v401 = vsub.f32 %v386, %v393
        %v402 = vsub.f32 %v387, %v395
        %v403 = vsub.f32 %v388, %v397
        %v404 = vadd.f32 %v401, 1.0
        %v405 = vadd.f32 %v402, 1.0
        %v406 = vadd.f32 %v403, 1.0
        %v407 = vmul.f32 %v404, 0.5
        %v408 = vmul.f32 %v405, 0.5
        %v409 = vmul.f32 %v406, 0.5
        %413 = vrot.lane.b32.xlu0 %v407, 126
        %v414 = vpop.permute.xlu0 %413
        %415 = vrot.lane.b32.xlu0 %v408, 126
        %v416 = vpop.permute.xlu0 %415
        %417 = vrot.lane.b32.xlu0 %v409, 126
        %v418 = vpop.permute.xlu0 %417
        %v422 = vadd.f32 %v386, %v414
        %v423 = vadd.f32 %v387, %v416
        %v424 = vadd.f32 %v388, %v418
        %v425 = vld [vmem:[%s319] sm:$0xff]
        %v426 = vld [vmem:[%s319 + $0x8] sm:$0xff]
        %v427 = vld [vmem:[%s319 + $0x10] sm:$0xff]
        %v428 = vlaneseq
        %v429 = vand.u32 %v428, 127
        %vm430 = vcmp.lt.s32.totalorder %v429, 0
        %v431 = vsub.s32 0, %v429
        %v432 = vsel %vm430, %v431, %v429
        %v433 = vshrl.u32 %v432, 1
        %v434 = vand.u32 %v432, 1
        %v435 = vsub.s32 0, %v434
        %v436 = vsel %vm430, %v435, %v434
        %vm437 = vcmp.ne.s32.totalorder %v436, 0
        %vm438 = vcmp.lt.s32.totalorder %v436, 0
        %vm439 = vmand %vm438, %vm437
        %v440 = vadd.s32 %v436, 2
        %v441 = vsel %vm439, %v440, %v436
        %vm442 = vcmp.eq.s32.totalorder %v441, 0
        %vm443 = vcmp.lt.s32.totalorder %v429, 0
        %v444 = vsub.s32 0, %v429
        %v445 = vsel %vm443, %v444, %v429
        %v446 = vshrl.u32 %v445, 2
        %v447 = vand.u32 %v445, 3
        %v448 = vsub.s32 0, %v447
        %v449 = vsel %vm443, %v448, %v447
        %vm450 = vcmp.ne.s32.totalorder %v449, 0
        %vm451 = vcmp.lt.s32.totalorder %v449, 0
        %vm452 = vmand %vm451, %vm450
        %v453 = vadd.s32 %v449, 4
        %v454 = vsel %vm452, %v453, %v449
        %vm455 = vcmp.lt.s32.totalorder %v454, 2
        %456 = vrot.lane.b32.xlu0 %v425, 2
        %v457 = vpop.permute.xlu0 %456
        %458 = vrot.lane.b32.xlu0 %v426, 2
        %v459 = vpop.permute.xlu0 %458
        %460 = vrot.lane.b32.xlu0 %v427, 2
        %v461 = vpop.permute.xlu0 %460
        %462 = vrot.lane.b32.xlu0 %v425, 126
        %v463 = vpop.permute.xlu0 %462
        %464 = vrot.lane.b32.xlu0 %v426, 126
        %v465 = vpop.permute.xlu0 %464
        %466 = vrot.lane.b32.xlu0 %v427, 126
        %v467 = vpop.permute.xlu0 %466
        %v468 = vsel %vm455, %v425, %v457
        %v469 = vsel %vm455, %v426, %v459
        %v470 = vsel %vm455, %v427, %v461
        %v471 = vsel %vm455, %v463, %v425
        %v472 = vsel %vm455, %v465, %v426
        %v473 = vsel %vm455, %v467, %v427
        %475 = vset.pattern.permute.xlu0 2
        %476 = vperm.xlu0 %475, %v404
        %v477 = vpop.permute.xlu0 %476
        %480 = vset.pattern.permute.xlu0 2
        %481 = vperm.xlu0 %480, %v405
        %v482 = vpop.permute.xlu0 %481
        %485 = vset.pattern.permute.xlu0 2
        %486 = vperm.xlu0 %485, %v406
        %v487 = vpop.permute.xlu0 %486
        %489 = vset.pattern.permute.xlu0 3
        %490 = vperm.xlu0 %489, %v404
        %v491 = vpop.permute.xlu0 %490
        %493 = vset.pattern.permute.xlu0 3
        %494 = vperm.xlu0 %493, %v405
        %v495 = vpop.permute.xlu0 %494
        %497 = vset.pattern.permute.xlu0 3
        %498 = vperm.xlu0 %497, %v406
        %v499 = vpop.permute.xlu0 %498
        %v501 = vsel %vm442, %v477, %v491
        %v502 = vsel %vm442, %v482, %v495
        %v503 = vsel %vm442, %v487, %v499
        %505 = vset.pattern.permute.xlu0 0
        %506 = vperm.xlu0 %505, %v422
        %v507 = vpop.permute.xlu0 %506
        %510 = vset.pattern.permute.xlu0 0
        %511 = vperm.xlu0 %510, %v423
        %v512 = vpop.permute.xlu0 %511
        %515 = vset.pattern.permute.xlu0 0
        %516 = vperm.xlu0 %515, %v424
        %v517 = vpop.permute.xlu0 %516
        %519 = vset.pattern.permute.xlu0 1
        %520 = vperm.xlu0 %519, %v422
        %v521 = vpop.permute.xlu0 %520
        %523 = vset.pattern.permute.xlu0 1
        %524 = vperm.xlu0 %523, %v423
        %v525 = vpop.permute.xlu0 %524
        %527 = vset.pattern.permute.xlu0 1
        %528 = vperm.xlu0 %527, %v424
        %v529 = vpop.permute.xlu0 %528
        %v531 = vsel %vm442, %v507, %v521
        %v532 = vsel %vm442, %v512, %v525
        %v533 = vsel %vm442, %v517, %v529
        %v534 = vmul.f32 %v468, 0.1
        %v535 = vmul.f32 %v469, 0.1
        %v536 = vmul.f32 %v470, 0.1
        %v537 = vmul.f32 %v534, %v501
        %v538 = vmul.f32 %v535, %v502
        %v539 = vmul.f32 %v536, %v503
        %v540 = vadd.f32 %v537, %v531
        %v541 = vadd.f32 %v538, %v532
        %v542 = vadd.f32 %v539, %v533
        %v543 = vmul.f32 %v471, 0.2
        %v544 = vmul.f32 %v472, 0.2
        %v545 = vmul.f32 %v473, 0.2
        %v546 = vmin.f32 %v543, 4.1351666
        %v547 = vmin.f32 %v544, 4.1351666
        %v548 = vmin.f32 %v545, 4.1351666
        %v549 = vmul.f32 %v546, 1.442695
        %v550 = vpow.pop %v549
        %v551 = vmul.f32 %v547, 1.442695
        %v552 = vpow.pop %v551
        %v553 = vmul.f32 %v548, 1.442695
        %v554 = vpow.pop %v553
        %v555 = vmul.f32 %v550, 0.5
        %v556 = vmul.f32 %v552, 0.5
        %v557 = vmul.f32 %v554, 0.5
        %v558 = vmul.f32 %v555, %v501
        %v559 = vmul.f32 %v556, %v502
        %v560 = vmul.f32 %v557, %v503
        %v561 = vsub.f32 %v540, %v558
        %v562 = vsub.f32 %v541, %v559
        %v563 = vsub.f32 %v542, %v560
        %v564 = vadd.f32 %v540, %v558
        %v565 = vadd.f32 %v541, %v559
        %v566 = vadd.f32 %v542, %v560
        %v567 = vsub.f32 %v564, 1.0
        %v568 = vsub.f32 %v565, 1.0
        %v569 = vsub.f32 %v566, 1.0
        %v570 = vsel %vm455, %v561, %v567
        %v571 = vsel %vm455, %v562, %v568
        %v572 = vsel %vm455, %v563, %v569
        %v573 = vld [vmem:[%s331] sm:$0xff]
        %v574 = vld [vmem:[%s331 + $0x8] sm:$0xff]
        %v575 = vld [vmem:[%s331 + $0x10] sm:$0xff]
        %577 = vset.pattern.permute.xlu0 0
        %578 = vperm.xlu0 %577, %v573
        %v579 = vpop.permute.xlu0 %578
        %582 = vset.pattern.permute.xlu0 0
        %583 = vperm.xlu0 %582, %v574
        %v584 = vpop.permute.xlu0 %583
        %587 = vset.pattern.permute.xlu0 0
        %588 = vperm.xlu0 %587, %v575
        %v589 = vpop.permute.xlu0 %588
        %591 = vset.pattern.permute.xlu0 1
        %592 = vperm.xlu0 %591, %v573
        %v593 = vpop.permute.xlu0 %592
        %595 = vset.pattern.permute.xlu0 1
        %596 = vperm.xlu0 %595, %v574
        %v597 = vpop.permute.xlu0 %596
        %599 = vset.pattern.permute.xlu0 1
        %600 = vperm.xlu0 %599, %v575
        %v601 = vpop.permute.xlu0 %600
        %v603 = vsel %vm442, %v579, %v593
        %v604 = vsel %vm442, %v584, %v597
        %v605 = vsel %vm442, %v589, %v601
        %v606 = vmax.f32 %v570, 0.0
        %v607 = vmax.f32 %v571, 0.0
        %v608 = vmax.f32 %v572, 0.0
        %v609 = vmin.f32 %v603, %v606
        %v610 = vmin.f32 %v604, %v607
        %v611 = vmin.f32 %v605, %v608
        %612 = vst [vmem:[%s301] sm:$0xff] %v609
        %613 = vst [vmem:[%s301 + $0x8] sm:$0xff] %v610
        %614 = vst [vmem:[%s301 + $0x10] sm:$0xff] %v611
        %vm615 = vcmp.gt.s32.totalorder %v429, 0
        %v616 = vsel %vm615, %v380, -1.0
        %v617 = vsel %vm615, %v381, -1.0
        %v618 = vsel %vm615, %v382, -1.0
        %v619 = vsel %vm349, %v616, -inf
        %620 = vmax.xlane.f32.xlu0 %v619
        %v621 = vpop.xlane.xlu0 %620
        %v622 = vsel %vm349, %v617, -inf
        %623 = vmax.xlane.f32.xlu0 %v622
        %v624 = vpop.xlane.xlu0 %623
        %v625 = vsel %vm349, %v618, -inf
        %626 = vmax.xlane.f32.xlu0 %v625
        %v627 = vpop.xlane.xlu0 %626
        %vm628 = vcmp.eq.f32.partialorder %v616, %v621
        %vm629 = vcmp.eq.f32.partialorder %v617, %v624
        %vm630 = vcmp.eq.f32.partialorder %v618, %v627
        %v631 = vsel %vm628, %v429, 32
        %v632 = vsel %vm629, %v429, 32
        %v633 = vsel %vm630, %v429, 32
        %v634 = vsel %vm349, %v631, 2147483647
        %v635 = vand.u32 %v634, 65535
        %v636 = vshra.s32 %v634, 16
        %v637 = vcvt.s32.f32 %v635
        %v638 = vcvt.s32.f32 %v636
        %639 = vmin.xlane.f32.xlu0 %v638
        %v640 = vpop.xlane.xlu0 %639
        %vm641 = vcmp.eq.f32.partialorder %v638, %v640
        %v642 = vsel %vm641, %v637, inf
        %643 = vmin.xlane.f32.xlu0 %v642
        %v644 = vpop.xlane.xlu0 %643
        %v645 = vcvt.f32.s32 %v644
        %v646 = vcvt.f32.s32 %v640
        %v647 = vshll.u32 %v646, 16
        %v648 = vadd.s32 %v647, %v645
        %v649 = vsel %vm349, %v632, 2147483647
        %v650 = vand.u32 %v649, 65535
        %v651 = vshra.s32 %v649, 16
        %v652 = vcvt.s32.f32 %v650
        %v653 = vcvt.s32.f32 %v651
        %654 = vmin.xlane.f32.xlu0 %v653
        %v655 = vpop.xlane.xlu0 %654
        %vm656 = vcmp.eq.f32.partialorder %v653, %v655
        %v657 = vsel %vm656, %v652, inf
        %658 = vmin.xlane.f32.xlu0 %v657
        %v659 = vpop.xlane.xlu0 %658
        %v660 = vcvt.f32.s32 %v659
        %v661 = vcvt.f32.s32 %v655
        %v662 = vshll.u32 %v661, 16
        %v663 = vadd.s32 %v662, %v660
        %v664 = vsel %vm349, %v633, 2147483647
        %v665 = vand.u32 %v664, 65535
        %v666 = vshra.s32 %v664, 16
        %v667 = vcvt.s32.f32 %v665
        %v668 = vcvt.s32.f32 %v666
        %669 = vmin.xlane.f32.xlu0 %v668
        %v670 = vpop.xlane.xlu0 %669
        %vm671 = vcmp.eq.f32.partialorder %v668, %v670
        %v672 = vsel %vm671, %v667, inf
        %673 = vmin.xlane.f32.xlu0 %v672
        %v674 = vpop.xlane.xlu0 %673
        %v675 = vcvt.f32.s32 %v674
        %v676 = vcvt.f32.s32 %v670
        %v677 = vshll.u32 %v676, 16
        %v678 = vadd.s32 %v677, %v675
        %vm679 = vcmp.eq.s32.totalorder %v429, 0
        %v680 = vcvt.s32.f32 %v648
        %v681 = vcvt.s32.f32 %v663
        %v682 = vcvt.s32.f32 %v678
        %v683 = vsel %vm679, %v621, %v680
        %v684 = vsel %vm679, %v624, %v681
        %v685 = vsel %vm679, %v627, %v682
        %vm686 = vcmask 15360
        %687 = vst.msk [vmem:[%s344] sm:$0xff] %vm686, %v683
        %688 = vst.msk [vmem:[%s344 + $0x8] sm:$0xff] %vm686, %v684
        %689 = vst.msk [vmem:[%s344 + $0x10] sm:$0xff] %vm686, %v685
        %s690 = smul.u32 3, %s21
        %p691 = scmp.lt.s32.totalorder %s690, 5
        %s692 = scalar_select %p691, %s690, 5
        %s693 = smul.addr %s692, 8
        %s694 = scalar_lea.vmem %s4, %s693
        %s695 = sand.u32 %s159, 1
        %s696 = scalar_lea.sflag [#allocation3], %s695
        %s697 = sand.u32 %s159, 1
        %s698 = smul.addr %s697, 24
        %s699 = scalar_lea.vmem [#allocation2], %s698
        %s700 = smul.u32 3, %s21
        %p701 = scmp.lt.s32.totalorder %s700, 5
        %s702 = scalar_select %p701, %s700, 5
        %s703 = smul.addr %s702, 8
        %s704 = scalar_lea.vmem %s6, %s703
        // Predicated region
        $region37: #{tpu_custom_call.1} parent=35 // pred_check
          %p705 = pneg %p143
        $region38: #{tpu_custom_call.1} parent=35 // pred_check_branch
          %707 = sbr.rel (%p705) target = $region40
        $region39: #{tpu_custom_call.1} parent=35 // pred_region
          %s708 = smul.u32 3, %s21
        $region40: #{tpu_custom_call.1} parent=35 // pred_fallthru
          _
        // Predicated region
        $region41: #{tpu_custom_call.1} parent=35 // pred_check
          %p709 = pneg %p169
        $region42: #{tpu_custom_call.1} parent=35 // pred_check_branch
          %711 = sbr.rel (%p709) target = $region44
        $region43: #{tpu_custom_call.1} parent=35 // pred_region
          %s712 = smul.u32 3, %s21
          %s714 = ssub.s32 384, 384
          %715 = vsyncadd %s696, %s714
          %s716 = smul.addr %s712, 128
          %s717 = scalar_lea.hbm %s5, %s716
          %s718 = sshll.u32 %s699, 4
          %s719 = int_to_ptr.vmem [resolvable:$true] %s718
          %724 = dma.vmem_to_hbm [thread:$0]  %s719, 384, %s717, %s696, 128, 128, 8
        $region44: #{tpu_custom_call.1} parent=35 // pred_fallthru
          _
        // Predicated region
        $region45: #{tpu_custom_call.1} parent=35 // pred_check
          %p725 = pneg %p195
        $region46: #{tpu_custom_call.1} parent=35 // pred_check_branch
          %727 = sbr.rel (%p725) target = $region48
        $region47: #{tpu_custom_call.1} parent=35 // pred_region
          %s728 = smul.u32 3, %s21
        $region48: #{tpu_custom_call.1} parent=35 // pred_fallthru
          _
      $region36: #{tpu_custom_call.1} parent=5 // pred_fallthru
        _
      %p729 = scmp.le.s32.totalorder 2, %s16
      // Predicated region
      $region49: #{tpu_custom_call.1} parent=5 // pred_check
        %p730 = pneg %p729
      $region50: #{tpu_custom_call.1} parent=5 // pred_check_branch
        %732 = sbr.rel (%p730) target = $region52
      $region51: #{tpu_custom_call.1} parent=5 // pred_region
        %s733 = ssub.s32 %s16, 2
        // Predicated region
        $region53: #{tpu_custom_call.1} parent=51 // pred_check
          %p734 = pneg %p149
        $region54: #{tpu_custom_call.1} parent=51 // pred_check_branch
          %736 = sbr.rel (%p734) target = $region56
        $region55: #{tpu_custom_call.1} parent=51 // pred_region
          %s737 = smul.u32 3, %s22
          %p738 = scmp.lt.s32.totalorder %s737, 5
          %s739 = scalar_select %p738, %s737, 5
          %s740 = smul.addr %s739, 8
          %s741 = scalar_lea.vmem %s4, %s740
        $region56: #{tpu_custom_call.1} parent=51 // pred_fallthru
          _
        // Predicated region
        $region57: #{tpu_custom_call.1} parent=51 // pred_check
          %p742 = pneg %p175
        $region58: #{tpu_custom_call.1} parent=51 // pred_check_branch
          %744 = sbr.rel (%p742) target = $region60
        $region59: #{tpu_custom_call.1} parent=51 // pred_region
          %s745 = sand.u32 %s160, 1
          %s746 = scalar_lea.sflag [#allocation3], %s745
          %s747 = sand.u32 %s160, 1
          %s748 = smul.addr %s747, 24
          %s749 = scalar_lea.vmem [#allocation2], %s748
          %750 = dma.done %s746, 384
        $region60: #{tpu_custom_call.1} parent=51 // pred_fallthru
          _
        // Predicated region
        $region61: #{tpu_custom_call.1} parent=51 // pred_check
          %p751 = pneg %p201
        $region62: #{tpu_custom_call.1} parent=51 // pred_check_branch
          %753 = sbr.rel (%p751) target = $region64
        $region63: #{tpu_custom_call.1} parent=51 // pred_region
          %s754 = smul.u32 3, %s22
          %p755 = scmp.lt.s32.totalorder %s754, 5
          %s756 = scalar_select %p755, %s754, 5
          %s757 = smul.addr %s756, 8
          %s758 = scalar_lea.vmem %s6, %s757
        $region64: #{tpu_custom_call.1} parent=51 // pred_fallthru
          _
      $region52: #{tpu_custom_call.1} parent=5 // pred_fallthru
        _
    $region6: #{tpu_custom_call.1} parent=1 // loop_footer
      %s20 = sadd.s32 1, %s16
    $region7: #{tpu_custom_call.1} parent=1 // loop_footer_branch
      %15 = sbr.rel target = $region3
    $region8: #{tpu_custom_call.1} parent=1 // loop_exit
      _
    %759 = vsyncpa [#allocation3], 1
    %s760 = scalar_lea.sflag [#allocation3], 1
    %761 = vsyncpa %s760, 1

</llo_original>
